<compile_context>
chip_gen: v5e
topology: v5e:2x2
jax: 0.10.0
libtpu: 0.0.40
codegen_flags: <defaults>
</compile_context>

<pallas_src>
import functools
from math import pi

import jax
import jax.numpy as jnp
from jax.experimental import pallas as pl
from jax.experimental.pallas import tpu as pltpu

EPS = 1e-12  # F.normalize default eps

# acos(x) ~= sqrt(1-x) * poly(x) on [0, 1], |error| <= ~2e-8 (A&S 4.4.47 style).
_ACOS_POLY = (1.5707963050, -0.2145988016, 0.0889789874, -0.0501743046,
              0.0308918810, -0.0170881256, 0.0066700901, -0.0012624911)


def _round_up(x, mult):
    return ((x + mult - 1) // mult) * mult


def _liarcface_kernel(x_ref, w_ref, lab_ref, o_ref, *, m, s, tile_c):
    # x_ref: (tn, E) normalized rows (bf16)      w_ref: (tc, E) normalized weights (bf16)
    # lab_ref: (tn, 1) int32 labels              o_ref: (tn, tc) logits
    # cosine = x @ w^T, contracting last dims of both operands on the MXU
    # (no transposed weight relayout), f32 accumulate.
    cosine = jax.lax.dot_general(
        x_ref[...], w_ref[...],
        dimension_numbers=(((1,), (1,)), ((), ())),
        preferred_element_type=jnp.float32,
    )
    # Clamp: fp rounding can push |cosine| slightly past 1.0.
    cosine = jnp.clip(cosine, -1.0, 1.0)

    # k*acos(|c|) via sqrt(1-|c|)*poly(|c|), with k = 2*s/pi folded into the
    # polynomial coefficients (constant-folded at trace time).
    k = 2.0 * float(s) / pi
    coeffs = tuple(k * c for c in _ACOS_POLY)
    a = jnp.abs(cosine)
    p = jnp.full_like(a, jnp.float32(coeffs[-1]))
    for c in coeffs[-2::-1]:
        p = p * a + jnp.float32(c)
    kt = jnp.sqrt(1.0 - a) * p          # == k * acos(|cosine|); sqrt -> EUP

    # Reflection acos(-x) = pi - acos(x) folded into the final affine:
    #   cos >= 0: s - k*theta = s - kt     cos < 0: s - k*(pi - t) = kt - s
    base = jnp.where(cosine >= 0.0, jnp.float32(s) - kt, kt - jnp.float32(s))

    # Margin only on the label column: compare static iota against the
    # tile-local label index; fused subtract of k*m.
    j = pl.program_id(1)
    col = jax.lax.broadcasted_iota(jnp.int32, cosine.shape, 1)
    hit = col == (lab_ref[...] - j * tile_c)          # (tn,1) broadcasts
    o_ref[...] = (base - jnp.where(hit, jnp.float32(k * m), jnp.float32(0.0))
                  ).astype(o_ref.dtype)


def _normalize_cast(v, dtype):
    # F.normalize: v / max(||v||, eps). Padded zero rows stay zero.
    n = jnp.maximum(jnp.sqrt(jnp.sum(v * v, axis=-1, keepdims=True)), EPS)
    return (v / n).astype(dtype)


def liarcface(x, label, weight, *, m=0.45, s=64.0,
              mxu_dtype=jnp.bfloat16, out_dtype=jnp.float32,
              vmem_budget_bytes=20 * 1024 * 1024):
    N, E = x.shape
    C, E2 = weight.shape
    assert E == E2

    in_bytes = jnp.dtype(mxu_dtype).itemsize
    out_bytes = jnp.dtype(out_dtype).itemsize

    # --- Tile selection -----------------------------------------------------
    # tn: keep the whole (padded) batch resident when modest, so the weight
    # matrix streams from HBM exactly once; cap to bound the output tile.
    tn = min(_round_up(N, 8), 512)
    Np = _round_up(N, tn)

    # tc: as large as the double-buffered VMEM budget allows (lane-aligned),
    # capped at 2048. Budget is v7x-safe (64 MiB physical, 32 MiB scoped).
    Cal = _round_up(C, 128)
    fixed = 2 * tn * E * in_bytes                       # x block (double-buffered)
    per_tc = 2 * (E * in_bytes + tn * out_bytes)        # weight block + output block
    tc_max = max(128, (vmem_budget_bytes - fixed) // per_tc)
    tc = int(min(2048, Cal, (tc_max // 128) * 128))
    tc = max(tc, 128)
    # v7x megacore: keep >= 2 grid blocks when the class axis allows it.
    if Np // tn == 1 and Cal // tc < 2 and Cal >= 256:
        tc = max(128, (Cal // 2 // 128) * 128)
    Cp = _round_up(C, tc)

    # --- Pad first, then normalize+cast in one fused pass --------------------
    xf = x.astype(jnp.float32)
    wf = weight.astype(jnp.float32)
    if Np != N:
        xf = jnp.pad(xf, ((0, Np - N), (0, 0)))
    if Cp != C:
        wf = jnp.pad(wf, ((0, Cp - C), (0, 0)))
    xn = _normalize_cast(xf, mxu_dtype)
    wn = _normalize_cast(wf, mxu_dtype)

    lab = label.reshape(N, 1).astype(jnp.int32)
    if Np != N:
        # -1 never matches a column id -> no margin on padded rows.
        lab = jnp.pad(lab, ((0, Np - N), (0, 0)), constant_values=-1)

    kernel = functools.partial(_liarcface_kernel, m=m, s=s, tile_c=tc)
    grid = (Np // tn, Cp // tc)   # j (classes) innermost: x block stays resident

    cost = pl.CostEstimate(
        flops=2 * Np * Cp * E,
        transcendentals=Np * Cp,
        bytes_accessed=(Np * E + Cp * E) * in_bytes + Np * Cp * out_bytes,
    )

    out = pl.pallas_call(
        kernel,
        out_shape=jax.ShapeDtypeStruct((Np, Cp), out_dtype),
        grid_spec=pltpu.PrefetchScalarGridSpec(
            num_scalar_prefetch=0,
            grid=grid,
            in_specs=[
                pl.BlockSpec((tn, E), lambda i, j: (i, 0)),   # normalized x rows
                pl.BlockSpec((tc, E), lambda i, j: (j, 0)),   # normalized weights
                pl.BlockSpec((tn, 1), lambda i, j: (i, 0)),   # labels
            ],
            out_specs=pl.BlockSpec((tn, tc), lambda i, j: (i, j)),
        ),
        compiler_params=pltpu.CompilerParams(
            dimension_semantics=("parallel", "parallel"),
            vmem_limit_bytes=32 * 1024 * 1024),
        cost_estimate=cost,
    )(xn, wn, lab)

    if Np != N or Cp != C:
        out = out[:N, :C]
    return out


def _reference(x, label, weight, m=0.45, s=64.0, mxu_dtype=jnp.float32):
    xn = x / jnp.maximum(jnp.linalg.norm(x, axis=-1, keepdims=True), EPS)
    wn = weight / jnp.maximum(jnp.linalg.norm(weight, axis=-1, keepdims=True), EPS)
    # Round operands the same way the kernel feeds the MXU, then accumulate f32.
    xn = xn.astype(mxu_dtype).astype(jnp.float32)
    wn = wn.astype(mxu_dtype).astype(jnp.float32)
    cosine = jnp.clip(xn @ wn.T, -1.0, 1.0)
    theta = jnp.arccos(cosine)
    margin = jax.nn.one_hot(label, weight.shape[0], dtype=jnp.float32) * m
    return s * (pi - 2.0 * (theta + margin)) / pi


if __name__ == "__main__":
    key = jax.random.PRNGKey(0)
    k1, k2, k3 = jax.random.split(key, 3)

    N = 8            # batch
    E = 32           # embedding size (module default is 512; small for demo)
    C = 256          # num_classes

    x = jax.random.normal(k1, (N, E), dtype=jnp.float32)
    weight = jax.random.normal(k2, (C, E), dtype=jnp.float32)
    label = jax.random.randint(k3, (N,), 0, C, dtype=jnp.int32)

    out = liarcface(x, label, weight)
    out = jax.block_until_ready(out)
    assert out.shape == (N, C)

    # Tight check against a reference using the same bf16 operand rounding
    # (isolates the acos approximation / MXU accumulation error).
    ref_bf16 = _reference(x, label, weight, mxu_dtype=jnp.bfloat16)
    assert jnp.allclose(out, ref_bf16, atol=2e-3, rtol=0), (
        float(jnp.max(jnp.abs(out - ref_bf16))))

    # Loose sanity check against the full-f32 PyTorch-equivalent reference
    # (bf16 MXU operands shift logits by O(1e-2) after the s=64 scaling).
    ref_f32 = _reference(x, label, weight, mxu_dtype=jnp.float32)
    assert float(jnp.max(jnp.abs(out - ref_f32))) < 0.5

    print("KERNEL_OK")
</pallas_src>

<mosaic_0001>
module attributes {stable_mosaic.version = 11 : i64} {
  func.func @_liarcface_kernel(%arg0: i32, %arg1: i32, %arg2: memref<8x32xbf16, #tpu.memory_space<vmem>>, %arg3: memref<128x32xbf16, #tpu.memory_space<vmem>>, %arg4: memref<8x1xi32, #tpu.memory_space<vmem>>, %arg5: memref<8x128xf32, #tpu.memory_space<vmem>>) attributes {dimension_semantics = [#tpu.dimension_semantics<parallel>, #tpu.dimension_semantics<parallel>], iteration_bounds = array<i64: 1, 2>, scalar_prefetch = 0 : i64, scratch_operands = 0 : i64, tpu.core_type = #tpu.core_type<tc>, window_params = [{transform_indices = @transform_0, window_bounds = array<i64: 8, 32>}, {transform_indices = @transform_1, window_bounds = array<i64: 128, 32>}, {transform_indices = @transform_2, window_bounds = array<i64: 8, 1>}, {transform_indices = @transform_3, window_bounds = array<i64: 8, 128>}]} {
    %c0 = arith.constant 0 : index
    %c0_0 = arith.constant 0 : index
    %0 = vector.load %arg2[%c0, %c0_0] : memref<8x32xbf16, #tpu.memory_space<vmem>>, vector<8x32xbf16>
    %c0_1 = arith.constant 0 : index
    %c0_2 = arith.constant 0 : index
    %1 = vector.load %arg3[%c0_1, %c0_2] : memref<128x32xbf16, #tpu.memory_space<vmem>>, vector<128x32xbf16>
    %cst = arith.constant dense<0.000000e+00> : vector<8x128xf32>
    %2 = tpu.matmul %0, %1, %cst {dimension_numbers = #tpu.dot_dimension_numbers<[1], [1], [0], [0], [0, 0, 1, 0], [], []>} : vector<8x32xbf16>, vector<128x32xbf16>, vector<8x128xf32> -> vector<8x128xf32>
    %cst_3 = arith.constant -1.000000e+00 : f32
    %cst_4 = arith.constant 1.000000e+00 : f32
    %3 = vector.broadcast %cst_3 : f32 to vector<8x128xf32>
    %4 = arith.maximumf %3, %2 : vector<8x128xf32>
    %5 = vector.broadcast %cst_4 : f32 to vector<8x128xf32>
    %6 = arith.minimumf %5, %4 : vector<8x128xf32>
    %7 = math.absf %6 : vector<8x128xf32>
    %cst_5 = arith.constant -0.0514385141 : f32
    %8 = vector.broadcast %cst_5 : f32 to vector<8x128xf32>
    %9 = arith.mulf %8, %7 : vector<8x128xf32>
    %cst_6 = arith.constant 0.271763921 : f32
    %10 = vector.broadcast %cst_6 : f32 to vector<8x128xf32>
    %11 = arith.addf %9, %10 : vector<8x128xf32>
    %12 = arith.mulf %11, %7 : vector<8x128xf32>
    %cst_7 = arith.constant -0.696232855 : f32
    %13 = vector.broadcast %cst_7 : f32 to vector<8x128xf32>
    %14 = arith.addf %12, %13 : vector<8x128xf32>
    %15 = arith.mulf %14, %7 : vector<8x128xf32>
    %cst_8 = arith.constant 1.25864851 : f32
    %16 = vector.broadcast %cst_8 : f32 to vector<8x128xf32>
    %17 = arith.addf %15, %16 : vector<8x128xf32>
    %18 = arith.mulf %17, %7 : vector<8x128xf32>
    %cst_9 = arith.constant -2.04428506 : f32
    %19 = vector.broadcast %cst_9 : f32 to vector<8x128xf32>
    %20 = arith.addf %18, %19 : vector<8x128xf32>
    %21 = arith.mulf %20, %7 : vector<8x128xf32>
    %cst_10 = arith.constant 3.62533021 : f32
    %22 = vector.broadcast %cst_10 : f32 to vector<8x128xf32>
    %23 = arith.addf %21, %22 : vector<8x128xf32>
    %24 = arith.mulf %23, %7 : vector<8x128xf32>
    %cst_11 = arith.constant -8.74354172 : f32
    %25 = vector.broadcast %cst_11 : f32 to vector<8x128xf32>
    %26 = arith.addf %24, %25 : vector<8x128xf32>
    %27 = arith.mulf %26, %7 : vector<8x128xf32>
    %cst_12 = arith.constant 6.400000e+01 : f32
    %28 = vector.broadcast %cst_12 : f32 to vector<8x128xf32>
    %29 = arith.addf %27, %28 : vector<8x128xf32>
    %cst_13 = arith.constant 1.000000e+00 : f32
    %30 = vector.broadcast %cst_13 : f32 to vector<8x128xf32>
    %31 = arith.subf %30, %7 : vector<8x128xf32>
    %32 = math.sqrt %31 : vector<8x128xf32>
    %33 = arith.mulf %32, %29 : vector<8x128xf32>
    %cst_14 = arith.constant 0.000000e+00 : f32
    %34 = vector.broadcast %cst_14 : f32 to vector<8x128xf32>
    %35 = arith.cmpf oge, %6, %34 : vector<8x128xf32>
    %cst_15 = arith.constant 6.400000e+01 : f32
    %36 = vector.broadcast %cst_15 : f32 to vector<8x128xf32>
    %37 = arith.subf %36, %33 : vector<8x128xf32>
    %cst_16 = arith.constant 6.400000e+01 : f32
    %38 = vector.broadcast %cst_16 : f32 to vector<8x128xf32>
    %39 = arith.subf %33, %38 : vector<8x128xf32>
    %40 = arith.select %35, %37, %39 : vector<8x128xi1>, vector<8x128xf32>
    %41 = tpu.iota {dimensions = array<i32: 1>} : vector<8x128xi32>
    %c0_17 = arith.constant 0 : index
    %c0_18 = arith.constant 0 : index
    %42 = vector.load %arg4[%c0_17, %c0_18] : memref<8x1xi32, #tpu.memory_space<vmem>>, vector<8x1xi32>
    %c128_i32 = arith.constant 128 : i32
    %43 = arith.muli %arg1, %c128_i32 : i32
    %44 = vector.broadcast %43 : i32 to vector<8x1xi32>
    %45 = arith.subi %42, %44 : vector<8x1xi32>
    %46 = vector.broadcast %45 : vector<8x1xi32> to vector<8x128xi32>
    %47 = arith.cmpi eq, %41, %46 : vector<8x128xi32>
    %cst_19 = arith.constant 18.33465 : f32
    %cst_20 = arith.constant 0.000000e+00 : f32
    %48 = vector.broadcast %cst_19 : f32 to vector<8x128xf32>
    %49 = vector.broadcast %cst_20 : f32 to vector<8x128xf32>
    %50 = arith.select %47, %48, %49 : vector<8x128xi1>, vector<8x128xf32>
    %51 = arith.subf %40, %50 : vector<8x128xf32>
    %c0_21 = arith.constant 0 : index
    %c0_22 = arith.constant 0 : index
    %52 = vector.load %arg5[%c0_21, %c0_22] : memref<8x128xf32, #tpu.memory_space<vmem>>, vector<8x128xf32>
    tpu.vector_store %arg5[%c0_21, %c0_22], %51 {strides = array<i32>} : memref<8x128xf32, #tpu.memory_space<vmem>>, vector<8x128xf32>,
    return
  }
  func.func @transform_0(%arg0: i32, %arg1: i32) -> (i32, i32) {
    %c0_i32 = arith.constant 0 : i32
    %c0_i32_0 = arith.constant 0 : i32
    return %arg0, %c0_i32 : i32, i32
  }
  func.func @transform_1(%arg0: i32, %arg1: i32) -> (i32, i32) {
    %c0_i32 = arith.constant 0 : i32
    %c0_i32_0 = arith.constant 0 : i32
    return %arg1, %c0_i32 : i32, i32
  }
  func.func @transform_2(%arg0: i32, %arg1: i32) -> (i32, i32) {
    %c0_i32 = arith.constant 0 : i32
    %c0_i32_0 = arith.constant 0 : i32
    return %arg0, %c0_i32 : i32, i32
  }
  func.func @transform_3(%arg0: i32, %arg1: i32) -> (i32, i32) {
    %c0_i32 = arith.constant 0 : i32
    return %arg0, %arg1 : i32, i32
  }
}

</mosaic_0001>

<llo_original>
// kernel: tpu_custom_call.1
$region0: #{tpu_custom_call.1}
  #allocation0 [shape = 'u32[]', space=smem, size = 0x4, offset = 0x4, fixed_abs, tag = 'smem constant byte address 0x4 - core index']
  #allocation1 [shape = 'u32[72,128]{1,0:T(1,128)}', space=vmem, size = 0x9000, scoped, tag = 'internal scratch']
  %s0 = inlined_call_operand.vmem [shape: bf16[8,32], index: 0, kind: input, shape index: {}]
  %s1 = inlined_call_operand.vmem [shape: bf16[256,32], index: 1, kind: input, shape index: {}]
  %s2 = inlined_call_operand.vmem [shape: s32[8,1], index: 2, kind: input, shape index: {}]
  %s3 = inlined_call_operand.hbm [shape: f32[8,256], index: 3, kind: output, shape index: {}]
  %s4 = sld [smem:[#allocation0]]
  $region45: #{tpu_custom_call.1} parent=0
    _
  %s6 = ssub.s32 1, %s4
  %s7 = scalar_select 0, %s6, %s4
  $region1: #{tpu_custom_call.1} parent=0
    #allocation2 [shape = 'u8[8192]{0}', space=vmem, size = 0x2000, scoped, tag = 'output window, operand 0']
    #allocation3 [shape = 's32[2]{0}', space=sflag, size = 0x8, scoped, tag = 'scoped memory for tpu_custom_call.1']
    %8 = vsyncpa [#allocation3], 0
    %s9 = scalar_lea.sflag [#allocation3], 1
    %10 = vsyncpa %s9, 0
    loop: start=0, step=1, limit=4
    $region2: #{tpu_custom_call.1} parent=1 // loop_pre_header
      _
    $region3: #{tpu_custom_call.1} parent=1 // loop_header
      %s12 = sphi 0, %s16
      %p13 = scmp.ge.s32.totalorder %s12, 4
      %s19 = sphi 0, %s31
      %s20 = sphi 0, %s27
      %s21 = sphi 0, %s19
      %s22 = sphi 0, %s20
      %s23 = sphi 0, %s21
      %s24 = sphi 0, %s22
      %s34 = sphi 0, %s36
      %s37 = sphi 0, %s34
      %s38 = sphi 0, %s37
      %s54 = sphi 0, %s38
      %s60 = sphi 0, %s62
      %s63 = sphi 0, %s60
      %s64 = sphi 0, %s63
      %s80 = sphi 0, %s64
      %s86 = sphi 0, %s88
      %s89 = sphi 0, %s86
      %s90 = sphi 0, %s89
      %s106 = sphi 0, %s90
      %s114 = sphi 0, %s116
      %s117 = sphi 0, %s114
      %s118 = sphi 0, %s117
      %s134 = sphi 0, %s118
    $region4: #{tpu_custom_call.1} parent=1 // loop_header_branch
      %15 = sbr.rel (%p13) target = $region8
    $region5: #{tpu_custom_call.1} parent=1 // loop_body
      %s17 = ssub.s32 %s12, 1
      %s18 = ssub.s32 %s12, 2
      %s25 = sadd.s32 1, %s20
      %p26 = scmp.ge.s32.totalorder %s25, 2
      %s27 = scalar_select %p26, 0, %s25
      %s28 = sadd.s32 1, %s19
      %s29 = scalar_select %p26, %s28, %s19
      %p30 = scmp.ge.s32.totalorder %s29, 1
      %s31 = scalar_select %p30, 0, %s29
      %s32 = ssub.s32 %s19, %s31
      %p33 = scmp.eq.s32.totalorder %s32, 0
      %s35 = sadd.s32 %s34, 1
      %s36 = scalar_select %p33, %s34, %s35
      %p39 = pneg %p33
      %p40 = scmp.eq.s32.totalorder %s12, 1
      %p41 = por %p39, %p40
      %p42 = scmp.ne.s32.totalorder %s34, %s37
      %p43 = scmp.eq.s32.totalorder %s12, 0
      %p44 = por %p42, %p43
      %p45 = scmp.ne.s32.totalorder %s34, %s37
      %p46 = scmp.eq.s32.totalorder %s17, 1
      %p47 = por %p45, %p46
      %p48 = scmp.ne.s32.totalorder %s37, %s38
      %p49 = scmp.eq.s32.totalorder %s17, 0
      %p50 = por %p48, %p49
      %p51 = scmp.ne.s32.totalorder %s37, %s38
      %p52 = scmp.eq.s32.totalorder %s18, 1
      %p53 = por %p51, %p52
      %p55 = scmp.ne.s32.totalorder %s38, %s54
      %p56 = scmp.eq.s32.totalorder %s18, 0
      %p57 = por %p55, %p56
      %s58 = ssub.s32 %s20, %s27
      %p59 = scmp.eq.s32.totalorder %s58, 0
      %s61 = sadd.s32 %s60, 1
      %s62 = scalar_select %p59, %s60, %s61
      %p65 = pneg %p59
      %p66 = scmp.eq.s32.totalorder %s12, 1
      %p67 = por %p65, %p66
      %p68 = scmp.ne.s32.totalorder %s60, %s63
      %p69 = scmp.eq.s32.totalorder %s12, 0
      %p70 = por %p68, %p69
      %p71 = scmp.ne.s32.totalorder %s60, %s63
      %p72 = scmp.eq.s32.totalorder %s17, 1
      %p73 = por %p71, %p72
      %p74 = scmp.ne.s32.totalorder %s63, %s64
      %p75 = scmp.eq.s32.totalorder %s17, 0
      %p76 = por %p74, %p75
      %p77 = scmp.ne.s32.totalorder %s63, %s64
      %p78 = scmp.eq.s32.totalorder %s18, 1
      %p79 = por %p77, %p78
      %p81 = scmp.ne.s32.totalorder %s64, %s80
      %p82 = scmp.eq.s32.totalorder %s18, 0
      %p83 = por %p81, %p82
      %s84 = ssub.s32 %s19, %s31
      %p85 = scmp.eq.s32.totalorder %s84, 0
      %s87 = sadd.s32 %s86, 1
      %s88 = scalar_select %p85, %s86, %s87
      %p91 = pneg %p85
      %p92 = scmp.eq.s32.totalorder %s12, 1
      %p93 = por %p91, %p92
      %p94 = scmp.ne.s32.totalorder %s86, %s89
      %p95 = scmp.eq.s32.totalorder %s12, 0
      %p96 = por %p94, %p95
      %p97 = scmp.ne.s32.totalorder %s86, %s89
      %p98 = scmp.eq.s32.totalorder %s17, 1
      %p99 = por %p97, %p98
      %p100 = scmp.ne.s32.totalorder %s89, %s90
      %p101 = scmp.eq.s32.totalorder %s17, 0
      %p102 = por %p100, %p101
      %p103 = scmp.ne.s32.totalorder %s89, %s90
      %p104 = scmp.eq.s32.totalorder %s18, 1
      %p105 = por %p103, %p104
      %p107 = scmp.ne.s32.totalorder %s90, %s106
      %p108 = scmp.eq.s32.totalorder %s18, 0
      %p109 = por %p107, %p108
      %s110 = ssub.s32 %s19, %s31
      %s111 = ssub.s32 %s20, %s27
      %s112 = sor.u32 %s110, %s111
      %p113 = scmp.eq.s32.totalorder %s112, 0
      %s115 = sadd.s32 %s114, 1
      %s116 = scalar_select %p113, %s114, %s115
      %p119 = pneg %p113
      %p120 = scmp.eq.s32.totalorder %s12, 1
      %p121 = por %p119, %p120
      %p122 = scmp.ne.s32.totalorder %s114, %s117
      %p123 = scmp.eq.s32.totalorder %s12, 0
      %p124 = por %p122, %p123
      %p125 = scmp.ne.s32.totalorder %s114, %s117
      %p126 = scmp.eq.s32.totalorder %s17, 1
      %p127 = por %p125, %p126
      %p128 = scmp.ne.s32.totalorder %s117, %s118
      %p129 = scmp.eq.s32.totalorder %s17, 0
      %p130 = por %p128, %p129
      %p131 = scmp.ne.s32.totalorder %s117, %s118
      %p132 = scmp.eq.s32.totalorder %s18, 1
      %p133 = por %p131, %p132
      %p135 = scmp.ne.s32.totalorder %s118, %s134
      %p136 = scmp.eq.s32.totalorder %s18, 0
      %p137 = por %p135, %p136
      %p138 = scmp.le.s32.totalorder 1, %s12
      %p139 = scmp.lt.s32.totalorder %s12, 3
      %p140 = pnand %p138, %p139
      %p141 = pneg %p140
      // Predicated region
      $region9: #{tpu_custom_call.1} parent=5 // pred_check
        _
      $region10: #{tpu_custom_call.1} parent=5 // pred_check_branch
        %143 = sbr.rel (%p140) target = $region12
      $region11: #{tpu_custom_call.1} parent=5 // pred_region
        %s144 = ssub.s32 %s12, 1
        // Predicated region
        $region13: #{tpu_custom_call.1} parent=11 // pred_check
          %p145 = pneg %p50
        $region14: #{tpu_custom_call.1} parent=11 // pred_check_branch
          %147 = sbr.rel (%p145) target = $region16
        $region15: #{tpu_custom_call.1} parent=11 // pred_region
          %p148 = scmp.lt.s32.totalorder %s21, 0
          %s149 = scalar_select %p148, %s21, 0
          %s150 = smul.addr %s149, 4
          %s151 = scalar_lea.vmem %s0, %s150
        $region16: #{tpu_custom_call.1} parent=11 // pred_fallthru
          _
        // Predicated region
        $region17: #{tpu_custom_call.1} parent=11 // pred_check
          %p152 = pneg %p102
        $region18: #{tpu_custom_call.1} parent=11 // pred_check_branch
          %154 = sbr.rel (%p152) target = $region20
        $region19: #{tpu_custom_call.1} parent=11 // pred_region
          %p155 = scmp.lt.s32.totalorder %s21, 0
          %s156 = scalar_select %p155, %s21, 0
          %s157 = smul.addr %s156, 8
          %s158 = scalar_lea.vmem %s2, %s157
        $region20: #{tpu_custom_call.1} parent=11 // pred_fallthru
          _
      $region12: #{tpu_custom_call.1} parent=5 // pred_fallthru
        _
      %p159 = scmp.lt.s32.totalorder %s12, 2
      // Predicated region
      $region21: #{tpu_custom_call.1} parent=5 // pred_check
        %p160 = pneg %p159
      $region22: #{tpu_custom_call.1} parent=5 // pred_check_branch
        %162 = sbr.rel (%p160) target = $region24
      $region23: #{tpu_custom_call.1} parent=5 // pred_region
        // Predicated region
        $region25: #{tpu_custom_call.1} parent=23 // pred_check
          %p163 = pneg %p70
        $region26: #{tpu_custom_call.1} parent=23 // pred_check_branch
          %165 = sbr.rel (%p163) target = $region28
        $region27: #{tpu_custom_call.1} parent=23 // pred_region
          %s166 = smul.u32 16, %s20
          %p167 = scmp.lt.s32.totalorder %s166, 31
          %s168 = scalar_select %p167, %s166, 31
          %s169 = smul.addr %s168, 4
          %s170 = scalar_lea.vmem %s1, %s169
          %s171 = smul.u32 16, %s20
        $region28: #{tpu_custom_call.1} parent=23 // pred_fallthru
          _
      $region24: #{tpu_custom_call.1} parent=5 // pred_fallthru
        _
      %p172 = scmp.le.s32.totalorder 1, %s12
      %p173 = scmp.lt.s32.totalorder %s12, 3
      %p174 = pnand %p172, %p173
      %p175 = pneg %p174
      // Predicated region
      $region29: #{tpu_custom_call.1} parent=5 // pred_check
        _
      $region30: #{tpu_custom_call.1} parent=5 // pred_check_branch
        %177 = sbr.rel (%p174) target = $region32
      $region31: #{tpu_custom_call.1} parent=5 // pred_region
        %s178 = ssub.s32 %s12, 1
        %p179 = scmp.lt.s32.totalorder %s21, 0
        %s180 = scalar_select %p179, %s21, 0
        %s181 = smul.addr %s180, 4
        %s182 = scalar_lea.vmem %s0, %s181
        %p183 = pneg %p50
        %p184 = pneg %p47
        %s185 = smul.u32 16, %s22
        %p186 = scmp.lt.s32.totalorder %s185, 31
        %s187 = scalar_select %p186, %s185, 31
        %s188 = smul.addr %s187, 4
        %s189 = scalar_lea.vmem %s1, %s188
        %p190 = pneg %p76
        %p191 = pneg %p73
        %p192 = scmp.lt.s32.totalorder %s21, 0
        %s193 = scalar_select %p192, %s21, 0
        %s194 = smul.addr %s193, 8
        %s195 = scalar_lea.vmem %s2, %s194
        %p196 = pneg %p102
        %p197 = pneg %p99
        %p198 = pneg %p130
        %p199 = pneg %p127
        %s200 = sand.u32 %s117, 1
        %s201 = scalar_lea.sflag [#allocation3], %s200
        %s202 = sand.u32 %s117, 1
        %s203 = smul.addr %s202, 8
        %s204 = scalar_lea.vmem [#allocation2], %s203
        %p205 = scmp.lt.s32.totalorder %s21, 0
        %s206 = scalar_select %p205, %s21, 0
        %s207 = smul.addr %s206, 4
        %s208 = scalar_lea.vmem %s0, %s207
        %s209 = smul.u32 16, %s22
        %p210 = scmp.lt.s32.totalorder %s209, 31
        %s211 = scalar_select %p210, %s209, 31
        %s212 = smul.addr %s211, 4
        %s213 = scalar_lea.vmem %s1, %s212
        %s214 = smul.u32 16, %s22
        %p215 = scmp.lt.s32.totalorder %s21, 0
        %s216 = scalar_select %p215, %s21, 0
        %s217 = smul.addr %s216, 8
        %s218 = scalar_lea.vmem %s2, %s217
        %v219 = vld [vmem:[%s208] sm:$0xf]
        %v220 = vld [vmem:[%s213] sm:$0xf]
        %v221 = vld [vmem:[%s213 + $0x4] sm:$0xf]
        %v222 = vld [vmem:[%s213 + $0x8] sm:$0xf]
        %v223 = vld [vmem:[%s213 + $0xc] sm:$0xf]
        %v224 = vld [vmem:[%s213 + $0x10] sm:$0xf]
        %v225 = vld [vmem:[%s213 + $0x14] sm:$0xf]
        %v226 = vld [vmem:[%s213 + $0x18] sm:$0xf]
        %v227 = vld [vmem:[%s213 + $0x1c] sm:$0xf]
        %v228 = vld [vmem:[%s213 + $0x20] sm:$0xf]
        %v229 = vld [vmem:[%s213 + $0x24] sm:$0xf]
        %v230 = vld [vmem:[%s213 + $0x28] sm:$0xf]
        %v231 = vld [vmem:[%s213 + $0x2c] sm:$0xf]
        %v232 = vld [vmem:[%s213 + $0x30] sm:$0xf]
        %v233 = vld [vmem:[%s213 + $0x34] sm:$0xf]
        %v234 = vld [vmem:[%s213 + $0x38] sm:$0xf]
        %v235 = vld [vmem:[%s213 + $0x3c] sm:$0xf]
        %v252 = vunpack.c.l.b16 %v220
        %v253 = vunpack.c.l.b16 %v221
        %v254 = vunpack.c.l.b16 %v222
        %v255 = vunpack.c.l.b16 %v223
        %v256 = vunpack.c.l.b16 %v224
        %v257 = vunpack.c.l.b16 %v225
        %v258 = vunpack.c.l.b16 %v226
        %v259 = vunpack.c.l.b16 %v227
        %v260 = vunpack.c.l.b16 %v228
        %v261 = vunpack.c.l.b16 %v229
        %v262 = vunpack.c.l.b16 %v230
        %v263 = vunpack.c.l.b16 %v231
        %v264 = vunpack.c.l.b16 %v232
        %v265 = vunpack.c.l.b16 %v233
        %v266 = vunpack.c.l.b16 %v234
        %v267 = vunpack.c.l.b16 %v235
        %v268 = vpack.c.b16 %v253, %v252
        %v269 = vpack.c.b16 %v255, %v254
        %v270 = vpack.c.b16 %v257, %v256
        %v271 = vpack.c.b16 %v259, %v258
        %v272 = vpack.c.b16 %v261, %v260
        %v273 = vpack.c.b16 %v263, %v262
        %v274 = vpack.c.b16 %v265, %v264
        %v275 = vpack.c.b16 %v267, %v266
        %vm276 = vcmask 261120
        %v278 = vsel %vm276, %v219, 0
        %v281 = vsel %vm276, %v268, 0
        %v284 = vsel %vm276, %v269, 0
        %v287 = vsel %vm276, %v270, 0
        %v290 = vsel %vm276, %v271, 0
        %v293 = vsel %vm276, %v272, 0
        %v296 = vsel %vm276, %v273, 0
        %v299 = vsel %vm276, %v274, 0
        %v302 = vsel %vm276, %v275, 0
        %304 = vmatpush.bf16.xpose.msra.mxu0 %v302
        %305 = vmatpush.bf16.xpose.msra.mxu0 %v299
        %306 = vmatpush.bf16.xpose.msra.mxu0 %v296
        %307 = vmatpush.bf16.xpose.msra.mxu0 %v293
        %308 = vmatpush.bf16.xpose.msra.mxu0 %v290
        %309 = vmatpush.bf16.xpose.msra.mxu0 %v287
        %310 = vmatpush.bf16.xpose.msra.mxu0 %v284
        %311 = vmatpush.bf16.xpose.msra.mxu0 %v281
        %312 = vmatmul.bf16.gmra.mxu0 %v278
        %v313 = vpop.f32.mrf.mxu0
        %v314 = vadd.f32 0.0, %v313
        %v315 = vpop.f32.mrf.mxu0
        %316 = vdwg.mxu0
        %v317 = vmax.f32 %v314, -1.0
        %v318 = vmin.f32 %v317, 1.0
        %v319 = vand.u32 2147483647, %v318
        %v320 = vmul.f32 %v319, -0.051438514
        %v321 = vadd.f32 %v320, 0.27176392
        %v322 = vmul.f32 %v321, %v319
        %v323 = vadd.f32 %v322, -0.69623286
        %v324 = vmul.f32 %v323, %v319
        %v325 = vadd.f32 %v324, 1.2586485
        %v326 = vmul.f32 %v325, %v319
        %v327 = vadd.f32 %v326, -2.044285
        %v328 = vmul.f32 %v327, %v319
        %v329 = vadd.f32 %v328, 3.6253302
        %v330 = vmul.f32 %v329, %v319
        %v331 = vadd.f32 %v330, -8.743542
        %v332 = vmul.f32 %v331, %v319
        %v333 = vadd.f32 %v332, 64.0
        %v334 = vsub.f32 1.0, %v319
        %v335 = vrsqrt.pop %v334
        %v336 = vmul.f32 %v335, %v334
        %v337 = vmul.f32 %v336, %v335
        %v338 = vmul.f32 0.5, %v337
        %v339 = vsub.f32 1.5, %v338
        %v340 = vmul.f32 %v335, %v339
        %v341 = vmul.f32 %v334, %v340
        %vm342 = vcmp.eq.f32.partialorder %v334, inf
        %v343 = vsel %vm342, %v334, %v341
        %vm344 = vcmp.eq.f32.partialorder %v334, 0.0
        %v345 = vand.u32 %v334, 2147483648
        %v346 = vsel %vm344, %v345, %v343
        %v347 = vmul.f32 %v346, %v333
        %vm348 = vcmp.ge.f32.partialorder %v318, 0.0
        %v349 = vsub.f32 64.0, %v347
        %v350 = vsub.f32 %v347, 64.0
        %v351 = vsel %vm348, %v349, %v350
        %v352 = vlaneseq
        %v353 = vand.u32 %v352, 127
        %v354 = vld [vmem:[%s218] sm:$0xff]
        %s355 = smul.u32 %s22, 128
        %v356 = vstv %s355
        %v357 = vsub.s32 %v354, %v356
        %358 = vset.pattern.permute.xlu0 0
        %359 = vperm.xlu0 %358, %v357
        %v360 = vpop.permute.xlu0 %359
        %vm361 = vcmp.eq.s32.totalorder %v353, %v360
        %v362 = vsel %vm361, 18.33465, 0.0
        %v363 = vsub.f32 %v351, %v362
        %364 = vst [vmem:[%s204] sm:$0xff] %v363
        %s365 = sand.u32 %s117, 1
        %s366 = scalar_lea.sflag [#allocation3], %s365
        %s367 = sand.u32 %s117, 1
        %s368 = smul.addr %s367, 8
        %s369 = scalar_lea.vmem [#allocation2], %s368
        // Predicated region
        $region33: #{tpu_custom_call.1} parent=31 // pred_check
          %p370 = pneg %p127
        $region34: #{tpu_custom_call.1} parent=31 // pred_check_branch
          %372 = sbr.rel (%p370) target = $region36
        $region35: #{tpu_custom_call.1} parent=31 // pred_region
          %374 = vsyncadd %s366, 0
          %s375 = smul.addr %s21, 2
          %s376 = sadd.s32 %s22, %s375
          %s377 = smul.addr %s376, 8
          %s378 = scalar_lea.hbm %s3, %s377
          %s380 = sshll.u32 %s369, 4
          %s381 = int_to_ptr.vmem [resolvable:$true] %s380
          %s382 = sshll.u32 %s378, 4
          %s383 = int_to_ptr.hbm [resolvable:$true] %s382
          %385 = dma.vmem_to_hbm [thread:$0]  %s381, 128, %s383, %s366
        $region36: #{tpu_custom_call.1} parent=31 // pred_fallthru
          _
      $region32: #{tpu_custom_call.1} parent=5 // pred_fallthru
        _
      %p386 = scmp.le.s32.totalorder 2, %s12
      // Predicated region
      $region37: #{tpu_custom_call.1} parent=5 // pred_check
        %p387 = pneg %p386
      $region38: #{tpu_custom_call.1} parent=5 // pred_check_branch
        %389 = sbr.rel (%p387) target = $region40
      $region39: #{tpu_custom_call.1} parent=5 // pred_region
        %s390 = ssub.s32 %s12, 2
        // Predicated region
        $region41: #{tpu_custom_call.1} parent=39 // pred_check
          %p391 = pneg %p133
        $region42: #{tpu_custom_call.1} parent=39 // pred_check_branch
          %393 = sbr.rel (%p391) target = $region44
        $region43: #{tpu_custom_call.1} parent=39 // pred_region
          %s394 = sand.u32 %s118, 1
          %s395 = scalar_lea.sflag [#allocation3], %s394
          %s396 = sand.u32 %s118, 1
          %s397 = smul.addr %s396, 8
          %s398 = scalar_lea.vmem [#allocation2], %s397
          %400 = dma.done %s395, 128
        $region44: #{tpu_custom_call.1} parent=39 // pred_fallthru
          _
      $region40: #{tpu_custom_call.1} parent=5 // pred_fallthru
        _
    $region6: #{tpu_custom_call.1} parent=1 // loop_footer
      %s16 = sadd.s32 1, %s12
    $region7: #{tpu_custom_call.1} parent=1 // loop_footer_branch
      %11 = sbr.rel target = $region3
    $region8: #{tpu_custom_call.1} parent=1 // loop_exit
      _
    %401 = vsyncpa [#allocation3], 1
    %s402 = scalar_lea.sflag [#allocation3], 1
    %403 = vsyncpa %s402, 1

</llo_original>
